<compile_context>
chip_gen: v5e
topology: v5e:2x2
jax: 0.10.0
libtpu: 0.0.40
codegen_flags: <defaults>
</compile_context>

<pallas_src>
import functools

import jax
import jax.numpy as jnp
from jax.experimental import pallas as pl
from jax.experimental.pallas import tpu as pltpu

_MIB = 1024 * 1024


def _triplet_row_kernel(a_ref, p_ref, n_ref, out_ref, *, margin):
    # Upcast in-kernel so bf16 inputs stream from HBM at half width.
    a = a_ref[...].astype(jnp.float32)
    p = p_ref[...].astype(jnp.float32)
    n = n_ref[...].astype(jnp.float32)

    # Fused distance difference: one elementwise pass over the lane-dense
    # (block_b, D) tile, then a single cross-lane reduction per row.
    diff = (a - p) ** 2 - (a - n) ** 2                 # (tb, D)
    d = jnp.sum(diff, axis=-1, keepdims=True)          # (tb, 1) = dp - dn
    out_ref[...] = jnp.maximum(d + margin, 0.0)        # per-row hinge loss


def _round_up(x, m):
    return ((x + m - 1) // m) * m


def _vmem_budget_bytes():
    """Generation-aware VMEM budget for the 3 double-buffered input slabs."""
    try:
        phys = int(pltpu.get_tpu_info().vmem_capacity_bytes)
    except Exception:
        phys = 64 * _MIB  # conservative fallback (v7x per-TensorCore figure)
    # ~45% of physical, capped: v5e/v6e (128 MiB) -> 56 MiB, v7x (64 MiB) -> ~28 MiB.
    return min(int(phys * 0.45), 56 * _MIB)


def _choose_tiling(B, D, itemsize, vmem_budget):
    """Pick (block_b, padded_B).  block_b is a sublane multiple; padded_B is a
    multiple of block_b (extra rows are zero-filled in the wrapper and dropped
    before the mean)."""
    sub = 8 if itemsize >= 4 else 16
    bytes_per_row = 6 * D * itemsize          # 3 inputs x 2 pipeline buffers
    rows_cap = max(sub, (vmem_budget // bytes_per_row) // sub * sub)

    b_aligned = _round_up(B, sub)
    if b_aligned <= rows_cap:
        # Whole batch fits under the budget.  Still split into >= 2 tiles when
        # possible so both v7x TensorCores get work (no-op on v5e/v6e).
        if b_aligned >= 2 * sub:
            block_b = _round_up(pl.cdiv(b_aligned, 2), sub)
        else:
            block_b = b_aligned
    else:
        block_b = rows_cap

    padded_b = _round_up(b_aligned, block_b)
    return block_b, padded_b


def triplet_loss(anchor, positive, negative, margin=1.0, block_b=None):
    B, D = anchor.shape
    assert positive.shape == (B, D) and negative.shape == (B, D)
    itemsize = jnp.dtype(anchor.dtype).itemsize
    sub = 8 if itemsize >= 4 else 16

    vmem_budget = _vmem_budget_bytes()
    if block_b is None:
        block_b, padded_b = _choose_tiling(B, D, itemsize, vmem_budget)
    else:
        assert block_b % sub == 0, (block_b, sub)
        padded_b = _round_up(B, block_b)

    # Zero-pad ragged batches so every tile is full.  Each padded (all-zero)
    # row contributes exactly `margin` to the hinge loss but is sliced off
    # before the mean, so semantics are unchanged.
    if padded_b != B:
        pad = ((0, padded_b - B), (0, 0))
        anchor = jnp.pad(anchor, pad)
        positive = jnp.pad(positive, pad)
        negative = jnp.pad(negative, pad)

    num_tiles = padded_b // block_b
    kernel = functools.partial(_triplet_row_kernel, margin=float(margin))

    # Explicit scoped-VMEM limit: exactly what the pipeline needs (3 inputs +
    # 1 output, double-buffered) plus headroom for Mosaic internal scratch.
    vmem_limit = int(6 * block_b * D * itemsize + 4 * block_b * 4 + 8 * _MIB)

    losses = pl.pallas_call(
        kernel,
        out_shape=jax.ShapeDtypeStruct((padded_b, 1), jnp.float32),
        grid_spec=pltpu.PrefetchScalarGridSpec(
            num_scalar_prefetch=0,
            grid=(num_tiles,),
            in_specs=[
                pl.BlockSpec((block_b, D), lambda i: (i, 0)),
                pl.BlockSpec((block_b, D), lambda i: (i, 0)),
                pl.BlockSpec((block_b, D), lambda i: (i, 0)),
            ],
            # Per-row losses: (block_b, 1) block is always legal (block_b is a
            # sublane multiple, last dim equals the full dim).
            out_specs=pl.BlockSpec((block_b, 1), lambda i: (i, 0)),
        ),
        compiler_params=pltpu.CompilerParams(
            # Tiles are independent partial results -> parallel (shards the
            # grid across v7x's two TensorCores; no-op on v5e/v6e).
            dimension_semantics=("parallel",),
            vmem_limit_bytes=vmem_limit,
        ),
    )(anchor, positive, negative)

    # Finish the mean over the *real* batch only (drops padded rows).
    return jnp.sum(losses[:B, 0]) / jnp.float32(B)


def _reference(anchor, positive, negative, margin):
    a = anchor.astype(jnp.float32)
    p = positive.astype(jnp.float32)
    n = negative.astype(jnp.float32)
    dp = jnp.sum((a - p) ** 2, axis=1)
    dn = jnp.sum((a - n) ** 2, axis=1)
    return jnp.mean(jnp.maximum(dp - dn + margin, 0.0))


if __name__ == "__main__":
    key = jax.random.PRNGKey(0)
    ks = jax.random.split(key, 9)

    # --- small f32 check (shapes implied by the module: (B, feat)) ---
    B, D = 8, 32
    a = jax.random.normal(ks[0], (B, D), dtype=jnp.float32)
    p = jax.random.normal(ks[1], (B, D), dtype=jnp.float32)
    n = jax.random.normal(ks[2], (B, D), dtype=jnp.float32)
    loss = triplet_loss(a, p, n, margin=1.0)
    jax.block_until_ready(loss)
    ref = _reference(a, p, n, 1.0)
    assert jnp.allclose(loss, ref, rtol=1e-5, atol=1e-5), (loss, ref)

    # --- bf16, multi-tile, explicit block_b (in-kernel upcast path) ---
    B2, D2 = 64, 256
    a2 = jax.random.normal(ks[3], (B2, D2), dtype=jnp.bfloat16)
    p2 = jax.random.normal(ks[4], (B2, D2), dtype=jnp.bfloat16)
    n2 = jax.random.normal(ks[5], (B2, D2), dtype=jnp.bfloat16)
    loss2 = triplet_loss(a2, p2, n2, margin=1.0, block_b=16)
    jax.block_until_ready(loss2)
    ref2 = _reference(a2, p2, n2, 1.0)
    assert jnp.allclose(loss2, ref2, rtol=1e-4, atol=1e-4), (loss2, ref2)

    # --- ragged batch (exercises zero-pad + auto tiling + >=2 tiles) ---
    B3, D3 = 50, 192
    a3 = jax.random.normal(ks[6], (B3, D3), dtype=jnp.float32)
    p3 = jax.random.normal(ks[7], (B3, D3), dtype=jnp.float32)
    n3 = jax.random.normal(ks[8], (B3, D3), dtype=jnp.float32)
    loss3 = triplet_loss(a3, p3, n3, margin=0.5)
    jax.block_until_ready(loss3)
    ref3 = _reference(a3, p3, n3, 0.5)
    assert jnp.allclose(loss3, ref3, rtol=1e-5, atol=1e-5), (loss3, ref3)

    print("KERNEL_OK")
</pallas_src>

<mosaic_0001>
module attributes {stable_mosaic.version = 11 : i64} {
  func.func @_triplet_row_kernel(%arg0: i32, %arg1: memref<8x32xf32, #tpu.memory_space<vmem>>, %arg2: memref<8x32xf32, #tpu.memory_space<vmem>>, %arg3: memref<8x32xf32, #tpu.memory_space<vmem>>, %arg4: memref<8x1xf32, #tpu.memory_space<vmem>>) attributes {dimension_semantics = [#tpu.dimension_semantics<parallel>], iteration_bounds = array<i64: 1>, scalar_prefetch = 0 : i64, scratch_operands = 0 : i64, tpu.core_type = #tpu.core_type<tc>, window_params = [{transform_indices = @transform_0, window_bounds = array<i64: 8, 32>}, {transform_indices = @transform_1, window_bounds = array<i64: 8, 32>}, {transform_indices = @transform_2, window_bounds = array<i64: 8, 32>}, {transform_indices = @transform_3, window_bounds = array<i64: 8, 1>}]} {
    %c0 = arith.constant 0 : index
    %c0_0 = arith.constant 0 : index
    %0 = vector.load %arg1[%c0, %c0_0] : memref<8x32xf32, #tpu.memory_space<vmem>>, vector<8x32xf32>
    %c0_1 = arith.constant 0 : index
    %c0_2 = arith.constant 0 : index
    %1 = vector.load %arg2[%c0_1, %c0_2] : memref<8x32xf32, #tpu.memory_space<vmem>>, vector<8x32xf32>
    %c0_3 = arith.constant 0 : index
    %c0_4 = arith.constant 0 : index
    %2 = vector.load %arg3[%c0_3, %c0_4] : memref<8x32xf32, #tpu.memory_space<vmem>>, vector<8x32xf32>
    %3 = arith.subf %0, %1 : vector<8x32xf32>
    %4 = arith.mulf %3, %3 : vector<8x32xf32>
    %5 = arith.subf %0, %2 : vector<8x32xf32>
    %6 = arith.mulf %5, %5 : vector<8x32xf32>
    %7 = arith.subf %4, %6 : vector<8x32xf32>
    %cst = arith.constant dense<0.000000e+00> : vector<8xf32>
    %8 = vector.multi_reduction <add>, %7, %cst [1] : vector<8x32xf32> to vector<8xf32>
    %9 = vector.shape_cast %8 : vector<8xf32> to vector<8x1xf32>
    %cst_5 = arith.constant 1.000000e+00 : f32
    %10 = vector.broadcast %cst_5 : f32 to vector<8x1xf32>
    %11 = arith.addf %9, %10 : vector<8x1xf32>
    %cst_6 = arith.constant 0.000000e+00 : f32
    %12 = vector.broadcast %cst_6 : f32 to vector<8x1xf32>
    %13 = arith.maximumf %11, %12 : vector<8x1xf32>
    %c0_7 = arith.constant 0 : index
    %c0_8 = arith.constant 0 : index
    %14 = vector.load %arg4[%c0_7, %c0_8] : memref<8x1xf32, #tpu.memory_space<vmem>>, vector<8x1xf32>
    tpu.vector_store %arg4[%c0_7, %c0_8], %13 {strides = array<i32>} : memref<8x1xf32, #tpu.memory_space<vmem>>, vector<8x1xf32>,
    return
  }
  func.func @transform_0(%arg0: i32) -> (i32, i32) {
    %c0_i32 = arith.constant 0 : i32
    %c0_i32_0 = arith.constant 0 : i32
    return %arg0, %c0_i32 : i32, i32
  }
  func.func @transform_1(%arg0: i32) -> (i32, i32) {
    %c0_i32 = arith.constant 0 : i32
    %c0_i32_0 = arith.constant 0 : i32
    return %arg0, %c0_i32 : i32, i32
  }
  func.func @transform_2(%arg0: i32) -> (i32, i32) {
    %c0_i32 = arith.constant 0 : i32
    %c0_i32_0 = arith.constant 0 : i32
    return %arg0, %c0_i32 : i32, i32
  }
  func.func @transform_3(%arg0: i32) -> (i32, i32) {
    %c0_i32 = arith.constant 0 : i32
    %c0_i32_0 = arith.constant 0 : i32
    return %arg0, %c0_i32 : i32, i32
  }
}

</mosaic_0001>

<llo_original>
// kernel: tpu_custom_call.1
$region0: #{tpu_custom_call.1}
  #allocation0 [shape = 'u32[]', space=smem, size = 0x4, offset = 0x4, fixed_abs, tag = 'smem constant byte address 0x4 - core index']
  #allocation1 [shape = 'u32[72,128]{1,0:T(1,128)}', space=vmem, size = 0x9000, scoped, tag = 'internal scratch']
  %s0 = inlined_call_operand.hbm [shape: f32[8,32], index: 0, kind: input, shape index: {}]
  %s1 = inlined_call_operand.hbm [shape: f32[8,32], index: 1, kind: input, shape index: {}]
  %s2 = inlined_call_operand.hbm [shape: f32[8,32], index: 2, kind: input, shape index: {}]
  %s3 = inlined_call_operand.vmem [shape: f32[8,1], index: 3, kind: output, shape index: {}]
  %s4 = sld [smem:[#allocation0]]
  $region34: #{tpu_custom_call.1} parent=0
    _
  %s6 = ssub.s32 1, %s4
  %s7 = scalar_select 0, %s6, %s4
  $region1: #{tpu_custom_call.1} parent=0
    #allocation2 [shape = 'u8[4096]{0}', space=vmem, size = 0x1000, scoped, tag = 'input window, operand 0, single buffered']
    #allocation3 [shape = 's32[1]{0}', space=sflag, size = 0x4, scoped, tag = 'scoped memory for tpu_custom_call.1']
    #allocation4 [shape = 'u8[4096]{0}', space=vmem, size = 0x1000, scoped, tag = 'input window, operand 1, single buffered']
    #allocation5 [shape = 's32[1]{0}', space=sflag, size = 0x4, scoped, tag = 'scoped memory for tpu_custom_call.1']
    #allocation6 [shape = 'u8[4096]{0}', space=vmem, size = 0x1000, scoped, tag = 'input window, operand 2, single buffered']
    %8 = vsyncpa [#allocation3], 0
    %9 = vsyncpa [#allocation5], 0
    // Predicated region
    $region2: #{tpu_custom_call.1} parent=1 // pred_check
      _
    $region3: #{tpu_custom_call.1} parent=1 // pred_check_branch
      %11 = sbr.rel (0) target = $region5
    $region4: #{tpu_custom_call.1} parent=1 // pred_region
      %13 = vsyncadd [#allocation3], 0
      %s15 = sshll.u32 %s0, 4
      %s16 = int_to_ptr.hbm [resolvable:$true] %s15
      %s17 = sshll.u32 [#allocation2], 4
      %s18 = int_to_ptr.vmem [resolvable:$true] %s17
      %20 = dma.hbm_to_vmem [thread:$0]  %s16, 128, %s18, [#allocation3]
    $region5: #{tpu_custom_call.1} parent=1 // pred_fallthru
      _
    // Predicated region
    $region6: #{tpu_custom_call.1} parent=1 // pred_check
      _
    $region7: #{tpu_custom_call.1} parent=1 // pred_check_branch
      %22 = sbr.rel (0) target = $region9
    $region8: #{tpu_custom_call.1} parent=1 // pred_region
      %24 = vsyncadd [#allocation5], 0
      %s26 = sshll.u32 %s1, 4
      %s27 = int_to_ptr.hbm [resolvable:$true] %s26
      %s28 = sshll.u32 [#allocation4], 4
      %s29 = int_to_ptr.vmem [resolvable:$true] %s28
      %31 = dma.hbm_to_vmem [thread:$0]  %s27, 128, %s29, [#allocation5]
    $region9: #{tpu_custom_call.1} parent=1 // pred_fallthru
      _
    // Predicated region
    $region10: #{tpu_custom_call.1} parent=1 // pred_check
      _
    $region11: #{tpu_custom_call.1} parent=1 // pred_check_branch
      %33 = sbr.rel (0) target = $region13
    $region12: #{tpu_custom_call.1} parent=1 // pred_region
      %35 = vsyncadd [#allocation5], 0
      %s37 = sshll.u32 %s2, 4
      %s38 = int_to_ptr.hbm [resolvable:$true] %s37
      %s39 = sshll.u32 [#allocation6], 4
      %s40 = int_to_ptr.vmem [resolvable:$true] %s39
      %42 = dma.hbm_to_vmem [thread:$0]  %s38, 128, %s40, [#allocation5]
    $region13: #{tpu_custom_call.1} parent=1 // pred_fallthru
      _
    // Predicated region
    $region14: #{tpu_custom_call.1} parent=1 // pred_check
      _
    $region15: #{tpu_custom_call.1} parent=1 // pred_check_branch
      %44 = sbr.rel (0) target = $region17
    $region16: #{tpu_custom_call.1} parent=1 // pred_region
      %46 = dma.done [#allocation3], 128
    $region17: #{tpu_custom_call.1} parent=1 // pred_fallthru
      _
    // Predicated region
    $region18: #{tpu_custom_call.1} parent=1 // pred_check
      _
    $region19: #{tpu_custom_call.1} parent=1 // pred_check_branch
      %48 = sbr.rel (0) target = $region21
    $region20: #{tpu_custom_call.1} parent=1 // pred_region
      %50 = dma.done [#allocation5], 128
    $region21: #{tpu_custom_call.1} parent=1 // pred_fallthru
      _
    // Predicated region
    $region22: #{tpu_custom_call.1} parent=1 // pred_check
      _
    $region23: #{tpu_custom_call.1} parent=1 // pred_check_branch
      %52 = sbr.rel (0) target = $region25
    $region24: #{tpu_custom_call.1} parent=1 // pred_region
      %54 = dma.done [#allocation5], 128
    $region25: #{tpu_custom_call.1} parent=1 // pred_fallthru
      _
    %v55 = vld [vmem:[#allocation2] sm:$0xff]
    %v56 = vld [vmem:[#allocation4] sm:$0xff]
    %v57 = vld [vmem:[#allocation6] sm:$0xff]
    %v58 = vsub.f32 %v55, %v56
    %v59 = vmul.f32 %v58, %v58
    %v60 = vsub.f32 %v55, %v57
    %v61 = vmul.f32 %v60, %v60
    %v62 = vsub.f32 %v59, %v61
    %vm63 = vcmask 261120
    %v64 = vsel %vm63, %v62, 0.0
    %65 = vadd.xlane.f32.xlu0 %v64
    %v66 = vpop.xlane.xlu0 %65
    %v67 = vadd.f32 %v66, 1.0
    %v68 = vmax.f32 %v67, 0.0
    %vm69 = vcmask 7168
    %70 = vst.msk [vmem:[%s3] sm:$0xff] %vm69, %v68
    // Predicated region
    $region26: #{tpu_custom_call.1} parent=1 // pred_check
      _
    $region27: #{tpu_custom_call.1} parent=1 // pred_check_branch
      %72 = sbr.rel (0) target = $region29
    $region28: #{tpu_custom_call.1} parent=1 // pred_region
      _
    $region29: #{tpu_custom_call.1} parent=1 // pred_fallthru
      _
    // Predicated region
    $region30: #{tpu_custom_call.1} parent=1 // pred_check
      _
    $region31: #{tpu_custom_call.1} parent=1 // pred_check_branch
      %74 = sbr.rel (0) target = $region33
    $region32: #{tpu_custom_call.1} parent=1 // pred_region
      _
    $region33: #{tpu_custom_call.1} parent=1 // pred_fallthru
      _
    %75 = vsyncpa [#allocation3], 1
    %76 = vsyncpa [#allocation5], 1

</llo_original>
